<compile_context>
chip_gen: v7x
topology: tpu7x:2x2x1
jax: 0.10.0
libtpu: 0.0.40
codegen_flags: <defaults>
</compile_context>

<pallas_src>
import jax
import jax.numpy as jnp
from jax.experimental import pallas as pl
from jax.experimental.pallas import tpu as pltpu


def _class_predictor_kernel(x_ref, wt_ref, label_ref,   # inputs
                            out_ref):                   # output (1, 2): [loss, acc]
    x = x_ref[...]                                     # (N, R), N = B*C
    wt = wt_ref[...]                                   # (R, C)  pre-transposed conv weight
    mask = (label_ref[...] > 0).astype(jnp.float32)    # (N, 1)

    N = x.shape[0]
    C = wt.shape[1]
    B = N // C

    # 1x1 conv (no bias) == linear.  Single MXU pass, canonical contraction
    # (RHS contraction axis is the sublane axis -> no in-kernel transpose).
    logits = jnp.dot(x, wt, preferred_element_type=jnp.float32)   # (N, C)

    # Target class of flat row r is r % C, computed in-kernel (no extra input).
    row_idx = jax.lax.broadcasted_iota(jnp.int32, (N, 1), 0)       # (N, 1)
    if (C & (C - 1)) == 0:                                         # power-of-two C
        tgt_cls = row_idx & (C - 1)
        sample_id = row_idx >> (C.bit_length() - 1)
    else:
        tgt_cls = jax.lax.rem(row_idx, jnp.int32(C))
        sample_id = row_idx // C
    col_idx = jax.lax.broadcasted_iota(jnp.int32, (N, C), 1)
    is_tgt = col_idx == tgt_cls                                    # (N, C) target one-hot

    # Cross-entropy per row.
    row_max = jnp.max(logits, axis=-1, keepdims=True)              # (N, 1)
    lse = row_max + jnp.log(
        jnp.sum(jnp.exp(logits - row_max), axis=-1, keepdims=True))
    tgt_logit = jnp.sum(jnp.where(is_tgt, logits, 0.0),
                        axis=-1, keepdims=True)                    # (N, 1)
    ce = lse - tgt_logit                                           # (N, 1)

    # Prediction is correct iff the target logit attains the row max
    # (differs from first-index argmax only on exact float ties).
    correct_row = (tgt_logit >= row_max).astype(jnp.float32)       # (N, 1)

    total_n = jnp.sum(mask, keepdims=True)                         # (1, 1)
    total_correct = jnp.sum(correct_row * mask, keepdims=True)     # (1, 1)

    # Per-sample CE mean over selected rows, summed over samples:
    # lane-dense segmented reduction over a (N, B) sample one-hot.
    seg = (jax.lax.broadcasted_iota(jnp.int32, (N, B), 1)
           == sample_id).astype(jnp.float32)                       # (N, B)
    masked_ce = ce * mask                                          # (N, 1)
    ce_b = jnp.sum(masked_ce * seg, axis=0, keepdims=True)         # (1, B)
    n_b = jnp.sum(mask * seg, axis=0, keepdims=True)               # (1, B)
    # Samples with no positive label contribute 0 (PyTorch skips them).
    loss = jnp.sum(ce_b / jnp.maximum(n_b, 1.0), keepdims=True) * (1.0 / B)  # (1, 1)
    acc = total_correct / jnp.maximum(total_n, 1.0)                # (1, 1)

    # Pack both scalars into the single (1, 2) output: one store, one output DMA.
    lane = jax.lax.broadcasted_iota(jnp.int32, (1, 2), 1)
    out_ref[...] = jnp.where(lane == 0, loss, acc)


def class_predictor(x, label, weight):
    """x: (B, C, R) f32, label: (B, C) int, weight: (C, R) f32 (1x1 conv kernel)."""
    B, C, R = x.shape
    N = B * C
    x_flat = x.reshape(N, R)                  # flat class rows
    w_t = weight.T                            # (R, C): contraction axis first for the MXU
    label_col = label.reshape(N, 1).astype(jnp.int32)

    vmem_spec = pl.BlockSpec(memory_space=pltpu.MemorySpace.VMEM)
    out = pl.pallas_call(
        _class_predictor_kernel,
        out_shape=jax.ShapeDtypeStruct((1, 2), jnp.float32),
        in_specs=[vmem_spec, vmem_spec, vmem_spec],
        out_specs=vmem_spec,
    )(x_flat, w_t, label_col)
    return out[0, 0], out[0, 1]


def _reference(x, label, weight):
    """Pure-JAX re-statement of the PyTorch forward for checking."""
    B, C, R = x.shape
    logits = jnp.einsum("bcr,kr->bck", x, weight)                # (B, C, C)
    mask = (label > 0).astype(jnp.float32)                       # (B, C)
    lse = jax.scipy.special.logsumexp(logits, axis=-1)           # (B, C)
    tgt = jnp.einsum("bcc->bc", logits)
    ce = lse - tgt
    n = jnp.sum(mask, axis=1)
    loss_per = jnp.sum(ce * mask, axis=1) / jnp.maximum(n, 1.0)
    loss = jnp.sum(jnp.where(n > 0, loss_per, 0.0)) / B
    pred = jnp.argmax(logits, axis=-1)
    correct = jnp.sum((pred == jnp.arange(C)[None, :]) * mask)
    acc = correct / jnp.maximum(jnp.sum(mask), 1.0)
    return loss, acc


if __name__ == "__main__":
    num_classes, rep_size, batch = 8, 32, 2   # batch must be 2 (module hard-codes range(2))

    key = jax.random.PRNGKey(0)
    kx, kw, kl = jax.random.split(key, 3)
    x = jax.random.normal(kx, (batch, num_classes, rep_size), dtype=jnp.float32)
    # deterministic init of the 1x1 conv weight (num_classes, representation_size)
    weight = 0.1 * jax.random.normal(kw, (num_classes, rep_size), dtype=jnp.float32)
    label = (jax.random.uniform(kl, (batch, num_classes)) > 0.5).astype(jnp.int32)
    label = label.at[:, 0].set(1)             # guarantee >= 1 positive per sample

    loss, acc = class_predictor(x, label, weight)
    jax.block_until_ready((loss, acc))

    ref_loss, ref_acc = _reference(x, label, weight)
    assert jnp.allclose(loss, ref_loss, atol=1e-2, rtol=1e-2), (loss, ref_loss)
    assert jnp.allclose(acc, ref_acc, atol=1e-2, rtol=1e-2), (acc, ref_acc)

    print("KERNEL_OK")
</pallas_src>

<mosaic_0001>
module attributes {stable_mosaic.version = 11 : i64} {
  func.func @_class_predictor_kernel(%arg0: memref<16x32xf32, #tpu.memory_space<vmem>>, %arg1: memref<32x8xf32, #tpu.memory_space<vmem>>, %arg2: memref<16x1xi32, #tpu.memory_space<vmem>>, %arg3: memref<1x2xf32, #tpu.memory_space<vmem>>) attributes {dimension_semantics = [], scalar_prefetch = 0 : i64, scratch_operands = 0 : i64, tpu.core_type = #tpu.core_type<tc>} {
    %c0 = arith.constant 0 : index
    %c0_0 = arith.constant 0 : index
    %0 = vector.load %arg0[%c0, %c0_0] : memref<16x32xf32, #tpu.memory_space<vmem>>, vector<16x32xf32>
    %c0_1 = arith.constant 0 : index
    %c0_2 = arith.constant 0 : index
    %1 = vector.load %arg1[%c0_1, %c0_2] : memref<32x8xf32, #tpu.memory_space<vmem>>, vector<32x8xf32>
    %c0_3 = arith.constant 0 : index
    %c0_4 = arith.constant 0 : index
    %2 = vector.load %arg2[%c0_3, %c0_4] : memref<16x1xi32, #tpu.memory_space<vmem>>, vector<16x1xi32>
    %c0_i32 = arith.constant 0 : i32
    %3 = vector.broadcast %c0_i32 : i32 to vector<16x1xi32>
    %4 = arith.cmpi sgt, %2, %3 : vector<16x1xi32>
    %5 = arith.extui %4 : vector<16x1xi1> to vector<16x1xi32>
    %6 = arith.sitofp %5 : vector<16x1xi32> to vector<16x1xf32>
    %cst = arith.constant dense<0.000000e+00> : vector<16x8xf32>
    %7 = tpu.matmul %0, %1, %cst {dimension_numbers = #tpu.dot_dimension_numbers<[1], [0], [0], [1], [0, 0, 1, 1], [], []>} : vector<16x32xf32>, vector<32x8xf32>, vector<16x8xf32> -> vector<16x8xf32>
    %8 = tpu.iota {dimensions = array<i32: 0>} : vector<16x1xi32>
    %c7_i32 = arith.constant 7 : i32
    %9 = vector.broadcast %c7_i32 : i32 to vector<16x1xi32>
    %10 = arith.andi %8, %9 : vector<16x1xi32>
    %c3_i32 = arith.constant 3 : i32
    %11 = vector.broadcast %c3_i32 : i32 to vector<16x1xi32>
    %12 = arith.shrsi %8, %11 : vector<16x1xi32>
    %13 = tpu.iota {dimensions = array<i32: 1>} : vector<16x8xi32>
    %14 = vector.broadcast %10 : vector<16x1xi32> to vector<16x8xi32>
    %15 = arith.cmpi eq, %13, %14 : vector<16x8xi32>
    %cst_5 = arith.constant dense<0xFF800000> : vector<16xf32>
    %16 = vector.multi_reduction <maximumf>, %7, %cst_5 [1] : vector<16x8xf32> to vector<16xf32>
    %17 = vector.shape_cast %16 : vector<16xf32> to vector<16x1xf32>
    %18 = vector.broadcast %17 : vector<16x1xf32> to vector<16x8xf32>
    %19 = arith.subf %7, %18 : vector<16x8xf32>
    %20 = math.exp %19 : vector<16x8xf32>
    %cst_6 = arith.constant dense<0.000000e+00> : vector<16xf32>
    %21 = vector.multi_reduction <add>, %20, %cst_6 [1] : vector<16x8xf32> to vector<16xf32>
    %22 = vector.shape_cast %21 : vector<16xf32> to vector<16x1xf32>
    %23 = math.log %22 : vector<16x1xf32>
    %24 = arith.addf %17, %23 : vector<16x1xf32>
    %cst_7 = arith.constant 0.000000e+00 : f32
    %25 = vector.broadcast %cst_7 : f32 to vector<16x8xf32>
    %26 = arith.select %15, %7, %25 : vector<16x8xi1>, vector<16x8xf32>
    %cst_8 = arith.constant dense<0.000000e+00> : vector<16xf32>
    %27 = vector.multi_reduction <add>, %26, %cst_8 [1] : vector<16x8xf32> to vector<16xf32>
    %28 = vector.shape_cast %27 : vector<16xf32> to vector<16x1xf32>
    %29 = arith.subf %24, %28 : vector<16x1xf32>
    %30 = arith.cmpf oge, %28, %17 : vector<16x1xf32>
    %31 = arith.extui %30 : vector<16x1xi1> to vector<16x1xi32>
    %32 = arith.sitofp %31 : vector<16x1xi32> to vector<16x1xf32>
    %33 = vector.shape_cast %6 : vector<16x1xf32> to vector<1x16x1xf32>
    %cst_9 = arith.constant dense<0.000000e+00> : vector<1xf32>
    %34 = vector.multi_reduction <add>, %33, %cst_9 [1, 2] : vector<1x16x1xf32> to vector<1xf32>
    %35 = vector.shape_cast %34 : vector<1xf32> to vector<1x1x1xf32>
    %36 = vector.extract %35[0, 0, 0] : f32 from vector<1x1x1xf32>
    %37 = vector.broadcast %36 : f32 to vector<1x1xf32>
    %38 = arith.mulf %32, %6 : vector<16x1xf32>
    %39 = vector.shape_cast %38 : vector<16x1xf32> to vector<1x16x1xf32>
    %cst_10 = arith.constant dense<0.000000e+00> : vector<1xf32>
    %40 = vector.multi_reduction <add>, %39, %cst_10 [1, 2] : vector<1x16x1xf32> to vector<1xf32>
    %41 = vector.shape_cast %40 : vector<1xf32> to vector<1x1x1xf32>
    %42 = vector.extract %41[0, 0, 0] : f32 from vector<1x1x1xf32>
    %43 = vector.broadcast %42 : f32 to vector<1x1xf32>
    %44 = tpu.iota {dimensions = array<i32: 1>} : vector<16x2xi32>
    %45 = vector.broadcast %12 : vector<16x1xi32> to vector<16x2xi32>
    %46 = arith.cmpi eq, %44, %45 : vector<16x2xi32>
    %47 = arith.extui %46 : vector<16x2xi1> to vector<16x2xi32>
    %48 = arith.sitofp %47 : vector<16x2xi32> to vector<16x2xf32>
    %49 = arith.mulf %29, %6 : vector<16x1xf32>
    %50 = vector.broadcast %49 : vector<16x1xf32> to vector<16x2xf32>
    %51 = arith.mulf %50, %48 : vector<16x2xf32>
    %cst_11 = arith.constant dense<0.000000e+00> : vector<2xf32>
    %52 = vector.multi_reduction <add>, %51, %cst_11 [0] : vector<16x2xf32> to vector<2xf32>
    %53 = vector.shape_cast %52 : vector<2xf32> to vector<1x2xf32>
    %54 = vector.broadcast %6 : vector<16x1xf32> to vector<16x2xf32>
    %55 = arith.mulf %54, %48 : vector<16x2xf32>
    %cst_12 = arith.constant dense<0.000000e+00> : vector<2xf32>
    %56 = vector.multi_reduction <add>, %55, %cst_12 [0] : vector<16x2xf32> to vector<2xf32>
    %57 = vector.shape_cast %56 : vector<2xf32> to vector<1x2xf32>
    %cst_13 = arith.constant 1.000000e+00 : f32
    %58 = vector.broadcast %cst_13 : f32 to vector<1x2xf32>
    %59 = arith.maximumf %57, %58 : vector<1x2xf32>
    %60 = arith.divf %53, %59 : vector<1x2xf32>
    %61 = vector.shape_cast %60 : vector<1x2xf32> to vector<1x1x2xf32>
    %cst_14 = arith.constant dense<0.000000e+00> : vector<1xf32>
    %62 = vector.multi_reduction <add>, %61, %cst_14 [1, 2] : vector<1x1x2xf32> to vector<1xf32>
    %63 = vector.shape_cast %62 : vector<1xf32> to vector<1x1x1xf32>
    %64 = vector.extract %63[0, 0, 0] : f32 from vector<1x1x1xf32>
    %65 = vector.broadcast %64 : f32 to vector<1x1xf32>
    %cst_15 = arith.constant 5.000000e-01 : f32
    %66 = vector.broadcast %cst_15 : f32 to vector<1x1xf32>
    %67 = arith.mulf %65, %66 : vector<1x1xf32>
    %cst_16 = arith.constant 1.000000e+00 : f32
    %68 = vector.broadcast %cst_16 : f32 to vector<1x1xf32>
    %69 = arith.maximumf %37, %68 : vector<1x1xf32>
    %70 = arith.divf %43, %69 : vector<1x1xf32>
    %71 = tpu.iota {dimensions = array<i32: 1>} : vector<1x2xi32>
    %c0_i32_17 = arith.constant 0 : i32
    %72 = vector.broadcast %c0_i32_17 : i32 to vector<1x2xi32>
    %73 = arith.cmpi eq, %71, %72 : vector<1x2xi32>
    %74 = vector.shape_cast %67 : vector<1x1xf32> to vector<1x1xf32>
    %75 = vector.broadcast %74 : vector<1x1xf32> to vector<1x2xf32>
    %76 = vector.shape_cast %70 : vector<1x1xf32> to vector<1x1xf32>
    %77 = vector.broadcast %76 : vector<1x1xf32> to vector<1x2xf32>
    %78 = arith.select %73, %75, %77 : vector<1x2xi1>, vector<1x2xf32>
    %c0_18 = arith.constant 0 : index
    %c0_19 = arith.constant 0 : index
    %79 = vector.load %arg3[%c0_18, %c0_19] : memref<1x2xf32, #tpu.memory_space<vmem>>, vector<1x2xf32>
    tpu.vector_store %arg3[%c0_18, %c0_19], %78 {strides = array<i32>} : memref<1x2xf32, #tpu.memory_space<vmem>>, vector<1x2xf32>,
    return
  }
}

</mosaic_0001>

<llo_original>
// kernel: tpu_custom_call.1
$region0: #{tpu_custom_call.1}
  #allocation0 [shape = 'u32[]', space=smem, size = 0x4, offset = 0x4, fixed_abs, tag = 'smem constant byte address 0x4 - core index']
  #allocation1 [shape = 'u32[144,128]{1,0:T(1,128)}', space=vmem, size = 0x12000, scoped, tag = 'internal scratch']
  %s0 = inlined_call_operand.vmem [shape: f32[16,32], index: 0, kind: input, shape index: {}]
  %s1 = inlined_call_operand.vmem [shape: f32[32,8], index: 1, kind: input, shape index: {}]
  %s2 = inlined_call_operand.vmem [shape: s32[16,1], index: 2, kind: input, shape index: {}]
  %s3 = inlined_call_operand.hbm [shape: f32[1,2], index: 3, kind: output, shape index: {}]
  %s4 = sld [smem:[#allocation0]]
  $region22: #{tpu_custom_call.1} parent=0
    _
  %s6 = ssub.s32 1, %s4
  %s7 = scalar_select 0, %s6, %s4
  $region1: #{tpu_custom_call.1} parent=0
    #allocation2 [shape = 'u8[512]{0}', space=vmem, size = 0x400, scoped, tag = 'output window, operand 0, single buffered']
    #allocation3 [shape = 's32[1]{0}', space=sflag, size = 0x4, scoped, tag = 'scoped memory for tpu_custom_call.1']
    %8 = vsyncpa [#allocation3], 0
    // Predicated region
    $region2: #{tpu_custom_call.1} parent=1 // pred_check
      _
    $region3: #{tpu_custom_call.1} parent=1 // pred_check_branch
      %10 = sbr.rel (0) target = $region5
    $region4: #{tpu_custom_call.1} parent=1 // pred_region
      _
    $region5: #{tpu_custom_call.1} parent=1 // pred_fallthru
      _
    // Predicated region
    $region6: #{tpu_custom_call.1} parent=1 // pred_check
      _
    $region7: #{tpu_custom_call.1} parent=1 // pred_check_branch
      %12 = sbr.rel (0) target = $region9
    $region8: #{tpu_custom_call.1} parent=1 // pred_region
      _
    $region9: #{tpu_custom_call.1} parent=1 // pred_fallthru
      _
    // Predicated region
    $region10: #{tpu_custom_call.1} parent=1 // pred_check
      _
    $region11: #{tpu_custom_call.1} parent=1 // pred_check_branch
      %14 = sbr.rel (0) target = $region13
    $region12: #{tpu_custom_call.1} parent=1 // pred_region
      _
    $region13: #{tpu_custom_call.1} parent=1 // pred_fallthru
      _
    %v15 = vld [vmem:[%s0] sm:$0xff]
    %v16 = vld [vmem:[%s0 + $0x8] sm:$0xff]
    %v17 = vld [vmem:[%s1] sm:$0xff]
    %v18 = vld [vmem:[%s1 + $0x8] sm:$0xff]
    %v19 = vld [vmem:[%s1 + $0x10] sm:$0xff]
    %v20 = vld [vmem:[%s1 + $0x18] sm:$0xff]
    %v21 = vld [vmem:[%s2] sm:$0xff]
    %v22 = vld [vmem:[%s2 + $0x8] sm:$0xff]
    %vm23 = vcmp.gt.s32.totalorder %v21, 0
    %vm24 = vcmp.gt.s32.totalorder %v22, 0
    %v25 = vsel %vm23, 1, 0
    %v26 = vsel %vm24, 1, 0
    %v27 = vcvt.s32.f32 %v25
    %v28 = vcvt.s32.f32 %v26
    %vm29 = vcmask 261120
    %v31 = vsel %vm29, %v15, 0
    %v34 = vsel %vm29, %v16, 0
    %36 = vmatprep.subr.mxu0 0.0
    %37 = vmatpush1.msra.mxu0 %v17
    %38 = vmatprep.subr.mxu0 0.0
    %39 = vmatpush1.msra.mxu0 %v18
    %40 = vmatprep.subr.mxu0 0.0
    %41 = vmatpush1.msra.mxu0 %v19
    %42 = vmatprep.subr.mxu0 0.0
    %43 = vmatpush1.msra.mxu0 %v20
    %44 = vmatprep.subr.mxu0 0.0
    %45 = vmatpush1.msra.mxu0 0.0
    %46 = vmatprep.subr.mxu0 0.0
    %47 = vmatpush1.msra.mxu0 0.0
    %48 = vmatprep.subr.mxu0 0.0
    %49 = vmatpush1.msra.mxu0 0.0
    %50 = vmatprep.subr.mxu0 0.0
    %51 = vmatpush1.msra.mxu0 0.0
    %52 = vmatprep.subr.mxu0 0.0
    %53 = vmatpush1.msra.mxu0 0.0
    %54 = vmatprep.subr.mxu0 0.0
    %55 = vmatpush1.msra.mxu0 0.0
    %56 = vmatprep.subr.mxu0 0.0
    %57 = vmatpush1.msra.mxu0 0.0
    %58 = vmatprep.subr.mxu0 0.0
    %59 = vmatpush1.msra.mxu0 0.0
    %60 = vmatprep.subr.mxu0 0.0
    %61 = vmatpush1.msra.mxu0 0.0
    %62 = vmatprep.subr.mxu0 0.0
    %63 = vmatpush1.msra.mxu0 0.0
    %64 = vmatprep.subr.mxu0 0.0
    %65 = vmatpush1.msra.mxu0 0.0
    %66 = vmatprep.subr.mxu0 0.0
    %67 = vmatpush1.msra.mxu0 0.0
    %68 = vmatprep.subr.mxu0 0.0
    %69 = vmatpush1.msra.mxu0 0.0
    %70 = vmatprep.subr.mxu0 0.0
    %71 = vmatpush1.msra.mxu0 0.0
    %72 = vmatprep.subr.mxu0 0.0
    %73 = vmatpush1.msra.mxu0 0.0
    %74 = vmatprep.subr.mxu0 0.0
    %75 = vmatpush1.msra.mxu0 0.0
    %76 = vmatprep.subr.mxu0 0.0
    %77 = vmatpush1.msra.mxu0 0.0
    %78 = vmatprep.subr.mxu0 0.0
    %79 = vmatpush1.msra.mxu0 0.0
    %80 = vmatprep.subr.mxu0 0.0
    %81 = vmatpush1.msra.mxu0 0.0
    %82 = vmatprep.subr.mxu0 0.0
    %83 = vmatpush1.msra.mxu0 0.0
    %84 = vmatprep.subr.mxu0 0.0
    %85 = vmatpush1.msra.mxu0 0.0
    %86 = vmatprep.subr.mxu0 0.0
    %87 = vmatpush1.msra.mxu0 0.0
    %88 = vmatprep.subr.mxu0 0.0
    %89 = vmatpush1.msra.mxu0 0.0
    %90 = vmatprep.subr.mxu0 0.0
    %91 = vmatpush1.msra.mxu0 0.0
    %92 = vmatprep.subr.mxu0 0.0
    %93 = vmatpush1.msra.mxu0 0.0
    %94 = vmatprep.subr.mxu0 0.0
    %95 = vmatpush1.msra.mxu0 0.0
    %96 = vmatprep.subr.mxu0 0.0
    %97 = vmatpush1.msra.mxu0 0.0
    %98 = vmatprep.subr.mxu0 0.0
    %99 = vmatpush1.msra.mxu0 0.0
    %100 = vmatprep.mubr.f32.mxu0 0.0
    %101 = vmatmul.mubr.f32.gmra.mrb[0].mxu0 %v31
    %v102 = vpop.f32.mrb[0].mxu0
    %v103 = vadd.f32 0.0, %v102
    %v104 = vpop.f32.mrb[0].mxu0
    %105 = vmatprep.mubr.f32.mxu0 0.0
    %106 = vmatmul.mubr.f32.gmra.mrb[0].mxu0 %v34
    %v107 = vpop.f32.mrb[0].mxu0
    %v108 = vadd.f32 0.0, %v107
    %v109 = vpop.f32.mrb[0].mxu0
    %110 = vdwg.mxu0
    %v111 = vlaneseq
    %v112 = vshrl.u32 %v111, 7
    %v113 = vadd.s32 %v112, 8
    %v114 = vand.u32 %v112, 7
    %v115 = vand.u32 %v113, 7
    %v116 = vshra.s32 %v112, 3
    %v117 = vshra.s32 %v113, 3
    %v118 = vlaneseq
    %v119 = vand.u32 %v118, 127
    %vm120 = vcmp.eq.s32.totalorder %v119, %v114
    %vm121 = vcmp.eq.s32.totalorder %v119, %v115
    %vm122 = vcmask 64512
    %v123 = vsel %vm122, %v103, -inf
    %124 = vmax.xlane.f32.xlu0 %v123
    %v125 = vpop.xlane.xlu0 %124
    %v126 = vsel %vm122, %v108, -inf
    %127 = vmax.xlane.f32.xlu0 %v126
    %v128 = vpop.xlane.xlu0 %127
    %v129 = vsub.f32 %v103, %v125
    %v130 = vsub.f32 %v108, %v128
    %v131 = vmul.f32 %v129, 1.442695
    %v132 = vpow.pop %v131
    %v133 = vmul.f32 %v130, 1.442695
    %v134 = vpow.pop %v133
    %v135 = vsel %vm122, %v132, 0.0
    %136 = vadd.xlane.f32.xlu0 %v135
    %v137 = vpop.xlane.xlu0 %136
    %v138 = vsel %vm122, %v134, 0.0
    %139 = vadd.xlane.f32.xlu0 %v138
    %v140 = vpop.xlane.xlu0 %139
    %v141 = vlog2.pop %v137
    %v142 = vmul.f32 %v141, 0.6931472
    %v143 = vlog2.pop %v140
    %v144 = vmul.f32 %v143, 0.6931472
    %v145 = vadd.f32 %v125, %v142
    %v146 = vadd.f32 %v128, %v144
    %v147 = vsel %vm120, %v103, 0.0
    %v148 = vsel %vm121, %v108, 0.0
    %v149 = vsel %vm122, %v147, 0.0
    %150 = vadd.xlane.f32.xlu0 %v149
    %v151 = vpop.xlane.xlu0 %150
    %v152 = vsel %vm122, %v148, 0.0
    %153 = vadd.xlane.f32.xlu0 %v152
    %v154 = vpop.xlane.xlu0 %153
    %v155 = vsub.f32 %v145, %v151
    %v156 = vsub.f32 %v146, %v154
    %vm157 = vcmp.ge.f32.partialorder %v151, %v125
    %vm158 = vcmp.ge.f32.partialorder %v154, %v128
    %v159 = vsel %vm157, 1, 0
    %v160 = vsel %vm158, 1, 0
    %v161 = vcvt.s32.f32 %v159
    %v162 = vcvt.s32.f32 %v160
    %vm163 = vcmask 7168
    %v164 = vsel %vm163, %v27, 0.0
    %v165 = vsel %vm163, %v28, 0.0
    %v166 = vadd.f32 %v164, %v165
    %167 = vadd.xlane.f32.xlu0 %v166
    %v168 = vpop.xlane.xlu0 %167
    %v169 = vrot.slane %v168, 4
    %v170 = vadd.f32 %v168, %v169
    %v171 = vrot.slane %v170, 2
    %v172 = vadd.f32 %v170, %v171
    %v173 = vrot.slane %v172, 1
    %v174 = vadd.f32 %v172, %v173
    %s175 = vtos %v174
    %v176 = vstv %s175
    %v177 = vmul.f32 %v161, %v27
    %v178 = vmul.f32 %v162, %v28
    %v179 = vsel %vm163, %v177, 0.0
    %v180 = vsel %vm163, %v178, 0.0
    %v181 = vadd.f32 %v179, %v180
    %182 = vadd.xlane.f32.xlu0 %v181
    %v183 = vpop.xlane.xlu0 %182
    %v184 = vrot.slane %v183, 4
    %v185 = vadd.f32 %v183, %v184
    %v186 = vrot.slane %v185, 2
    %v187 = vadd.f32 %v185, %v186
    %v188 = vrot.slane %v187, 1
    %v189 = vadd.f32 %v187, %v188
    %s190 = vtos %v189
    %v191 = vstv %s190
    %vm192 = vcmp.eq.s32.totalorder %v119, %v116
    %vm193 = vcmp.eq.s32.totalorder %v119, %v117
    %v194 = vsel %vm192, 1, 0
    %v195 = vsel %vm193, 1, 0
    %v196 = vcvt.s32.f32 %v194
    %v197 = vcvt.s32.f32 %v195
    %v198 = vmul.f32 %v155, %v27
    %v199 = vmul.f32 %v156, %v28
    %201 = vset.pattern.permute.xlu0 0
    %202 = vperm.xlu0 %201, %v198
    %v203 = vpop.permute.xlu0 %202
    %206 = vset.pattern.permute.xlu0 0
    %207 = vperm.xlu0 %206, %v199
    %v208 = vpop.permute.xlu0 %207
    %v210 = vmul.f32 %v203, %v196
    %v211 = vmul.f32 %v208, %v197
    %vm212 = vcmask 15360
    %v213 = vsel %vm212, %v210, 0.0
    %v214 = vsel %vm212, %v211, 0.0
    %v215 = vadd.f32 %v213, %v214
    %v216 = vrot.slane %v215, 4
    %v217 = vadd.f32 %v215, %v216
    %v218 = vrot.slane %v217, 2
    %v219 = vadd.f32 %v217, %v218
    %v220 = vrot.slane %v219, 1
    %v221 = vadd.f32 %v219, %v220
    %223 = vset.pattern.permute.xlu0 0
    %224 = vperm.xlu0 %223, %v27
    %v225 = vpop.permute.xlu0 %224
    %228 = vset.pattern.permute.xlu0 0
    %229 = vperm.xlu0 %228, %v28
    %v230 = vpop.permute.xlu0 %229
    %v232 = vmul.f32 %v225, %v196
    %v233 = vmul.f32 %v230, %v197
    %v234 = vsel %vm212, %v232, 0.0
    %v235 = vsel %vm212, %v233, 0.0
    %v236 = vadd.f32 %v234, %v235
    %v237 = vrot.slane %v236, 4
    %v238 = vadd.f32 %v236, %v237
    %v239 = vrot.slane %v238, 2
    %v240 = vadd.f32 %v238, %v239
    %v241 = vrot.slane %v240, 1
    %v242 = vadd.f32 %v240, %v241
    %v243 = vmax.f32 %v242, 1.0
    %v244 = vrcp.pop %v243
    %v245 = vmul.f32 %v221, %v244
    %vm246 = vcmask 8192
    %v247 = vsel %vm246, %v245, 0.0
    %248 = vadd.xlane.f32.xlu0 %v247
    %v249 = vpop.xlane.xlu0 %248
    %v250 = vrot.slane %v249, 4
    %v251 = vadd.f32 %v249, %v250
    %v252 = vrot.slane %v251, 2
    %v253 = vadd.f32 %v251, %v252
    %v254 = vrot.slane %v253, 1
    %v255 = vadd.f32 %v253, %v254
    %s256 = vtos %v255
    %v257 = vstv %s256
    %v258 = vmul.f32 %v257, 0.5
    %v259 = vmax.f32 %v176, 1.0
    %v260 = vrcp.pop %v259
    %v261 = vmul.f32 %v191, %v260
    %vm262 = vcmp.eq.s32.totalorder %v119, 0
    %v263 = vsel %vm262, %v258, %v261
    %264 = vst.msk [vmem:[#allocation2] sm:$0x1] %vm246, %v263
    // Predicated region
    $region14: #{tpu_custom_call.1} parent=1 // pred_check
      _
    $region15: #{tpu_custom_call.1} parent=1 // pred_check_branch
      %266 = sbr.rel (0) target = $region17
    $region16: #{tpu_custom_call.1} parent=1 // pred_region
      %s268 = ssub.s32 16, 16
      %269 = vsyncadd [#allocation3], %s268
      %s271 = sshll.u32 [#allocation2], 4
      %s272 = int_to_ptr.vmem [resolvable:$true] %s271
      %274 = dma.vmem_to_hbm [thread:$0]  %s272, 16, %s3, [#allocation3]
    $region17: #{tpu_custom_call.1} parent=1 // pred_fallthru
      _
    // Predicated region
    $region18: #{tpu_custom_call.1} parent=1 // pred_check
      _
    $region19: #{tpu_custom_call.1} parent=1 // pred_check_branch
      %276 = sbr.rel (0) target = $region21
    $region20: #{tpu_custom_call.1} parent=1 // pred_region
      %277 = dma.done [#allocation3], 16
    $region21: #{tpu_custom_call.1} parent=1 // pred_fallthru
      _
    %278 = vsyncpa [#allocation3], 1

</llo_original>
